<compile_context>
chip_gen: v6e
topology: v6e:2x2x1
jax: 0.10.0
libtpu: 0.0.40
codegen_flags: <defaults>
</compile_context>

<pallas_src>
import numpy as np
import jax
import jax.numpy as jnp
from jax.experimental import pallas as pl
from jax.experimental.pallas import tpu as pltpu


# ------------------------------------------------------------------ fused kernel
def coattn_fused_kernel(
    scal_ref,                         # SMEM (2,)  : [sigmoid(eta), 1 - sigmoid(delta)]
    ht_ref, xb_ref,                   # (N_A,F_A) bf16, (N_B,F_B) bf16 raw node features
    wa_ref, ba_ref, wb_ref, bb_ref,   # hetlinear weights (bf16) / biases (f32)
    wenc_ref, benc_ref,               # RSN stand-in encoder weights (D,D) bf16, (1,D) f32
    esum_ref, attn_ref,               # (1,D) e1_emb+e2_emb f32, (1,D) attention vec f32
    wcat_ref, bcat_ref,               # (2D,D)=[W_fs;W_fe] bf16, (1,D)=b_fs+b_fe f32
    u_inst_ref, v_inst_ref, hn_ref,   # (E_inst,1) int32 instance endpoints / mid-B node
    eids_ref,                         # (1,E_inst) int32 owning 'mp' edge id
    u_mp_ref, v_mp_ref,               # (E_mp,1)   int32 'mp' edge endpoints
    v_mp_row_ref,                     # (1,E_mp)   int32 (row orientation for M)
    inv_cnt_ref, mp_ind_ref,          # (E_mp,1) f32 exact 1/cnt (host), cnt>0 mask
    is_m_ref, is_s_ref,               # (E_mp,1) f32 prob>1 / prob==1 masks (host)
    out_ref,                          # (N_A,128) f32: [out(0:D) | m_sum | s_sum | pad]
):
    f32 = jnp.float32
    bf16 = jnp.bfloat16
    N_A = ht_ref.shape[0]
    N_B = xb_ref.shape[0]
    E_mp = u_mp_ref.shape[0]
    D = wa_ref.shape[1]
    LANES = out_ref.shape[1]

    def bdot(a, b):
        # bf16 MXU operands, f32 accumulation (bf16-native MXU on v5e/v6e/v7x).
        return jnp.dot(a.astype(bf16), b.astype(bf16), preferred_element_type=f32)

    # ---- hetlinear on target & mid-node features (feat_dropout(0) = identity).
    inputs = bdot(ht_ref[...], wa_ref[...]) + ba_ref[...]      # (N_A, D) f32
    midB = bdot(xb_ref[...], wb_ref[...]) + bb_ref[...]        # (N_B, D) f32
    h_dst = inputs                                             # dst == src == target

    # ---- one-hot builders from the tiny int32 index vectors (exact in bf16).
    # TODO(synk): at production sizes replace with CSR scalar-prefetch segment sums.
    def gather_onehot(idx_col, n):    # (E,1) int32 -> (E,n) f32 ; rows pick table rows
        iota = jax.lax.broadcasted_iota(jnp.int32, (idx_col.shape[0], n), 1)
        return (iota == idx_col).astype(f32)

    def scatter_onehot(idx_row, n):   # (1,E) int32 -> (n,E) f32 ; segment-sum matrix
        iota = jax.lax.broadcasted_iota(jnp.int32, (n, idx_row.shape[1]), 0)
        return (iota == idx_row).astype(f32)

    # combined u+v gather (one MXU pass instead of two)
    uv_oh = gather_onehot(u_inst_ref[...], N_A) + gather_onehot(v_inst_ref[...], N_A)
    hn_oh = gather_onehot(hn_ref[...], N_B)                    # (E_inst, N_B)
    u_mp_oh = gather_onehot(u_mp_ref[...], N_A)                # (E_mp, N_A)
    v_mp_oh = gather_onehot(v_mp_ref[...], N_A)
    G = scatter_onehot(eids_ref[...], E_mp)                    # (E_mp, E_inst)
    M = scatter_onehot(v_mp_row_ref[...], N_A)                 # (N_A, E_mp) dst incidence

    # ---- metapath-instance encoder (RSN stand-in): analytic sequence mean.
    # mean over [x[u], e1_emb, midB[hn], e2_emb, x[v]] == (x[u]+x[v]+midB[hn]+e1+e2)/5
    seq_mean = (bdot(uv_oh, inputs) + bdot(hn_oh, midB) + esum_ref[...]) * 0.2
    h_inst = jnp.tanh(bdot(seq_mean, wenc_ref[...]) + benc_ref[...])   # (E_inst, D)

    # ---- groupby_mean over the owning 'mp' edge (exact host-side 1/cnt).
    h_mean = bdot(G, h_inst) * inv_cnt_ref[...]                # (E_mp, D)

    # ---- local attention score per 'mp' edge (all f32 on VPU/EUP).
    es_u = bdot(u_mp_oh, inputs)                               # srcdata 'es'[u]
    ed_v = bdot(v_mp_oh, inputs)                               # dstdata 'ed'[v]
    sig_eta = jnp.full((1, 1), scal_ref[0], f32)
    omsd = jnp.full((1, 1), scal_ref[1], f32)                  # 1 - sigmoid(delta)
    e1 = jnp.sum(es_u * ed_v, axis=-1, keepdims=True)
    e2 = jnp.sum(attn_ref[...] * h_mean, axis=-1, keepdims=True)
    # Reference masks e1 AND e2 by mp_ind:  e = mp_ind * (e1 + e2).
    score = omsd * jnp.tanh(mp_ind_ref[...] * (sig_eta * e1 + (1.0 - sig_eta) * e2))

    # ---- edge_softmax, normalized on the dst side.
    # a = ex / denom[v]  =>  dot(M, a*x) = dot(M, ex*x) / denom  (per-dst scalar),
    # so no per-edge denominator gather is needed.  The global max shift is exact
    # per segment (shift-invariant) and safe because |score| < 1 (tanh * (1-sig)).
    ex = jnp.exp(score - jnp.max(score))                       # (E_mp, 1)

    # ---- ONE lane-dense 128-wide RHS slab -> single MXU pass through M.
    pad = jnp.zeros((E_mp, LANES - (2 * D + 3)), f32)
    slab = jnp.concatenate(
        [ex * es_u,                    # cols [0, D)       -> ft (unnormalized)
         ex * h_mean,                  # cols [D, 2D)      -> ft2 (unnormalized)
         ex,                           # col  2D           -> softmax denominator
         is_m_ref[...] * score,        # col  2D+1         -> m_sum
         is_s_ref[...] * score,        # col  2D+2         -> s_sum
         pad], axis=-1)                                        # (E_mp, 128)
    agg = bdot(M, slab)                                        # (N_A, 128)

    ft_cat = agg[:, 0:2 * D]                                   # [sum ex*es | sum ex*h_mean]
    denom = agg[:, 2 * D:2 * D + 1]
    m_sum = agg[:, 2 * D + 1:2 * D + 2]
    s_sum = agg[:, 2 * D + 2:2 * D + 3]

    # ---- output: fc_src(ft) + fc_edge(ft2) + residual, relu.
    # Division by denom commutes with the right-matmul, so normalize after.
    denom_g = jnp.where(denom > 0.0, denom, 1.0)
    rst = bdot(ft_cat, wcat_ref[...]) / denom_g + bcat_ref[...]
    out32 = jnp.maximum(rst + h_dst, 0.0)                      # (N_A, D)

    # ---- one lane-dense (N_A, 128) store: [out | m_sum | s_sum | zero pad].
    out_pad = jnp.zeros((N_A, LANES - (D + 2)), f32)
    out_ref[...] = jnp.concatenate([out32, m_sum, s_sum, out_pad], axis=-1)


# --------------------------------------------------------------------- wrapper
def coattn_conv_forward(params, graph, h_target, x_B):
    """Forward pass of CoattnConv (num_heads=1, feat/attn dropout=0, is_first=True)."""
    f32 = jnp.float32
    bf16 = jnp.bfloat16
    i32 = jnp.int32
    D = params["W_A"].shape[1]
    N_A, F_A = h_target.shape
    N_B, F_B = x_B.shape
    E_mp = graph["u_mp"].shape[0]
    E_inst = graph["u_inst"].shape[0]
    LANES = 128

    # ---- param-only scalars: sigmoid computed once here, ride in SMEM.
    sig_eta = jax.nn.sigmoid(params["eta"].reshape(()))
    omsd = 1.0 - jax.nn.sigmoid(params["delta"].reshape(()))
    scalars = jnp.stack([sig_eta, omsd]).astype(f32)           # (2,) -> SMEM

    # ---- graph-structure-only precompute (exact, outside the kernel).
    eids = graph["eids"].astype(i32)
    u_mp = graph["u_mp"].astype(i32)
    v_mp = graph["v_mp"].astype(i32)
    prob = graph["prob"].astype(f32).reshape(E_mp, 1)

    cnt = jnp.zeros((E_mp,), f32).at[eids].add(1.0)            # instances per mp edge
    inv_cnt = (1.0 / jnp.maximum(cnt, 1.0))[:, None]           # exact, matches where(cnt>0,cnt,1)
    mp_ind = (cnt > 0).astype(f32)[:, None]
    is_m = (prob > 1.0).astype(f32)                            # multi-instance edges
    is_s = (jnp.abs(prob - 1.0) < 0.5).astype(f32)             # prob == 1 (integer counts)
    m_cnt = jnp.zeros((N_A,), f32).at[v_mp].add(is_m[:, 0])    # per-dst, structural
    s_cnt = jnp.zeros((N_A,), f32).at[v_mp].add(is_s[:, 0])

    # ---- fold tiny parameter reshapes once.
    e_sum = (params["e1_emb"] + params["e2_emb"])[None, :].astype(f32)      # (1, D)
    W_cat = jnp.concatenate([params["W_fs"], params["W_fe"]], axis=0).astype(bf16)  # (2D, D)
    b_cat = (params["b_fs"] + params["b_fe"]).astype(f32)                   # (1, D)

    vmem_args = (
        h_target.astype(bf16), x_B.astype(bf16),
        params["W_A"].astype(bf16), params["b_A"].astype(f32),
        params["W_B"].astype(bf16), params["b_B"].astype(f32),
        params["W_enc"].astype(bf16), params["b_enc"].astype(f32),
        e_sum, params["attn"].astype(f32),
        W_cat, b_cat,
        graph["u_inst"].astype(i32)[:, None], graph["v_inst"].astype(i32)[:, None],
        graph["hn_inst"].astype(i32)[:, None], eids[None, :],
        u_mp[:, None], v_mp[:, None], v_mp[None, :],
        inv_cnt, mp_ind, is_m, is_s,
    )

    # ---- advisory cost estimate for XLA scheduling around the custom call.
    flops = 2 * (N_A * F_A * D + N_B * F_B * D + E_inst * N_A * D + E_inst * N_B * D
                 + E_inst * D * D + E_mp * E_inst * D + 2 * E_mp * N_A * D
                 + N_A * E_mp * LANES + N_A * 2 * D * D)
    transcendentals = E_inst * D + 3 * E_mp
    bytes_accessed = (sum(int(np.prod(a.shape)) * a.dtype.itemsize for a in vmem_args)
                      + scalars.size * 4 + N_A * LANES * 4)

    vmem = pltpu.MemorySpace.VMEM
    smem = pltpu.MemorySpace.SMEM
    out_slab = pl.pallas_call(
        coattn_fused_kernel,
        in_specs=[pl.BlockSpec(memory_space=smem)]
        + [pl.BlockSpec(memory_space=vmem)] * len(vmem_args),
        out_specs=pl.BlockSpec(memory_space=vmem),
        out_shape=jax.ShapeDtypeStruct((N_A, LANES), f32),
        compiler_params=pltpu.CompilerParams(vmem_limit_bytes=32 * 1024 * 1024),
        cost_estimate=pl.CostEstimate(flops=flops, transcendentals=transcendentals,
                                      bytes_accessed=bytes_accessed),
    )(scalars, *vmem_args)

    out = out_slab[:, :D][:, None, :]                          # stack over 1 etype
    m_sum = out_slab[:, D]
    s_sum = out_slab[:, D + 1]
    mean_m = m_sum / jnp.where(m_cnt > 0, m_cnt, 1.0)
    mean_s = s_sum / jnp.where(s_cnt > 0, s_cnt, 1.0)
    ind = (m_cnt > 0) & (s_cnt > 0)
    return out, mean_m, mean_s, ind


# ------------------------------------------------------------------------ main
if __name__ == "__main__":
    # Sizes: tf_dict = {'A': 16, 'B': 12}, out_dim = 32, num_heads = 1.
    N_A, N_B = 8, 6
    F_A, F_B = 16, 12
    D = 32

    key = jax.random.PRNGKey(0)
    ks = jax.random.split(key, 16)

    def init(k, shape, fan_in):
        return (jax.random.normal(k, shape, jnp.float32) / np.sqrt(fan_in)).astype(jnp.float32)

    params = {
        "W_A": init(ks[0], (F_A, D), F_A), "b_A": jnp.zeros((1, D), jnp.float32),
        "W_B": init(ks[1], (F_B, D), F_B), "b_B": jnp.zeros((1, D), jnp.float32),
        "W_enc": init(ks[2], (D, D), D),   "b_enc": jnp.zeros((1, D), jnp.float32),
        "W_fs": init(ks[3], (D, D), D),    "b_fs": init(ks[4], (1, D), D),
        "W_fe": init(ks[5], (D, D), D),    "b_fe": init(ks[6], (1, D), D),
        "attn": init(ks[7], (1, D), D),                        # attn[etype], heads=1
        "eta": init(ks[8], (1, 1), 1),                         # eta[etype]
        "delta": init(ks[9], (1, 1), 1),                       # delta
        "e1_emb": init(ks[10], (D,), D),                       # ehetembs['e1']
        "e2_emb": init(ks[11], (D,), D),                       # ehetembs['e2']
    }

    # Deterministic synthetic heterograph (same as previous versions).
    u_mp = np.array([(n + 1 + 2 * (e % 2)) % N_A for n in range(N_A) for e in range(2)],
                    dtype=np.int32)
    v_mp = np.array([n for n in range(N_A) for _ in range(2)], dtype=np.int32)
    E_mp = u_mp.shape[0]                                       # 16
    counts = np.array([1 + (e % 2) for e in range(E_mp)], dtype=np.int32)  # 1 or 2 inst
    eids, u_inst, v_inst, hn_inst = [], [], [], []
    for e in range(E_mp):
        for j in range(counts[e]):
            eids.append(e)
            u_inst.append(u_mp[e])
            v_inst.append(v_mp[e])
            hn_inst.append((3 * e + j) % N_B)
    graph = {
        "u_mp": jnp.asarray(u_mp), "v_mp": jnp.asarray(v_mp),
        "u_inst": jnp.asarray(np.array(u_inst, np.int32)),
        "v_inst": jnp.asarray(np.array(v_inst, np.int32)),
        "hn_inst": jnp.asarray(np.array(hn_inst, np.int32)),
        "eids": jnp.asarray(np.array(eids, np.int32)),
        "prob": jnp.asarray(counts.astype(np.float32))[:, None],   # edata['prob']
    }

    h_target = jax.random.normal(ks[12], (N_A, F_A), jnp.float32)
    x_B = jax.random.normal(ks[13], (N_B, F_B), jnp.float32)

    out, mean_m, mean_s, ind = coattn_conv_forward(params, graph, h_target, x_B)
    jax.block_until_ready((out, mean_m, mean_s, ind))

    # Final boolean selection (data-dependent shape) done on host, like mean_m[ind].
    ind_np = np.asarray(ind)
    mean_m_sel = np.asarray(mean_m)[ind_np]
    mean_s_sel = np.asarray(mean_s)[ind_np]
    assert out.shape == (N_A, 1, D)
    assert mean_m_sel.shape == mean_s_sel.shape
    assert np.all(np.isfinite(np.asarray(out)))
    assert np.all(np.isfinite(np.asarray(mean_m))) and np.all(np.isfinite(np.asarray(mean_s)))
    print("KERNEL_OK")
</pallas_src>

<mosaic_0001>
module attributes {stable_mosaic.version = 11 : i64} {
  func.func @coattn_fused_kernel(%arg0: memref<2xf32, #tpu.memory_space<smem>>, %arg1: memref<8x16xbf16, #tpu.memory_space<vmem>>, %arg2: memref<6x12xbf16, #tpu.memory_space<vmem>>, %arg3: memref<16x32xbf16, #tpu.memory_space<vmem>>, %arg4: memref<1x32xf32, #tpu.memory_space<vmem>>, %arg5: memref<12x32xbf16, #tpu.memory_space<vmem>>, %arg6: memref<1x32xf32, #tpu.memory_space<vmem>>, %arg7: memref<32x32xbf16, #tpu.memory_space<vmem>>, %arg8: memref<1x32xf32, #tpu.memory_space<vmem>>, %arg9: memref<1x32xf32, #tpu.memory_space<vmem>>, %arg10: memref<1x32xf32, #tpu.memory_space<vmem>>, %arg11: memref<64x32xbf16, #tpu.memory_space<vmem>>, %arg12: memref<1x32xf32, #tpu.memory_space<vmem>>, %arg13: memref<24x1xi32, #tpu.memory_space<vmem>>, %arg14: memref<24x1xi32, #tpu.memory_space<vmem>>, %arg15: memref<24x1xi32, #tpu.memory_space<vmem>>, %arg16: memref<1x24xi32, #tpu.memory_space<vmem>>, %arg17: memref<16x1xi32, #tpu.memory_space<vmem>>, %arg18: memref<16x1xi32, #tpu.memory_space<vmem>>, %arg19: memref<1x16xi32, #tpu.memory_space<vmem>>, %arg20: memref<16x1xf32, #tpu.memory_space<vmem>>, %arg21: memref<16x1xf32, #tpu.memory_space<vmem>>, %arg22: memref<16x1xf32, #tpu.memory_space<vmem>>, %arg23: memref<16x1xf32, #tpu.memory_space<vmem>>, %arg24: memref<8x128xf32, #tpu.memory_space<vmem>>) attributes {dimension_semantics = [], scalar_prefetch = 0 : i64, scratch_operands = 0 : i64, tpu.core_type = #tpu.core_type<tc>} {
    %c0 = arith.constant 0 : index
    %c0_0 = arith.constant 0 : index
    %0 = vector.load %arg1[%c0, %c0_0] : memref<8x16xbf16, #tpu.memory_space<vmem>>, vector<8x16xbf16>
    %c0_1 = arith.constant 0 : index
    %c0_2 = arith.constant 0 : index
    %1 = vector.load %arg3[%c0_1, %c0_2] : memref<16x32xbf16, #tpu.memory_space<vmem>>, vector<16x32xbf16>
    %cst = arith.constant dense<0.000000e+00> : vector<8x32xf32>
    %2 = tpu.matmul %0, %1, %cst {dimension_numbers = #tpu.dot_dimension_numbers<[1], [0], [0], [1], [0, 0, 1, 1], [], []>} : vector<8x16xbf16>, vector<16x32xbf16>, vector<8x32xf32> -> vector<8x32xf32>
    %c0_3 = arith.constant 0 : index
    %c0_4 = arith.constant 0 : index
    %3 = vector.load %arg4[%c0_3, %c0_4] : memref<1x32xf32, #tpu.memory_space<vmem>>, vector<1x32xf32>
    %4 = vector.broadcast %3 : vector<1x32xf32> to vector<8x32xf32>
    %5 = arith.addf %2, %4 : vector<8x32xf32>
    %c0_5 = arith.constant 0 : index
    %c0_6 = arith.constant 0 : index
    %6 = vector.load %arg2[%c0_5, %c0_6] : memref<6x12xbf16, #tpu.memory_space<vmem>>, vector<6x12xbf16>
    %c0_7 = arith.constant 0 : index
    %c0_8 = arith.constant 0 : index
    %7 = vector.load %arg5[%c0_7, %c0_8] : memref<12x32xbf16, #tpu.memory_space<vmem>>, vector<12x32xbf16>
    %cst_9 = arith.constant dense<0.000000e+00> : vector<6x32xf32>
    %8 = tpu.matmul %6, %7, %cst_9 {dimension_numbers = #tpu.dot_dimension_numbers<[1], [0], [0], [1], [0, 0, 1, 1], [], []>} : vector<6x12xbf16>, vector<12x32xbf16>, vector<6x32xf32> -> vector<6x32xf32>
    %c0_10 = arith.constant 0 : index
    %c0_11 = arith.constant 0 : index
    %9 = vector.load %arg6[%c0_10, %c0_11] : memref<1x32xf32, #tpu.memory_space<vmem>>, vector<1x32xf32>
    %10 = vector.broadcast %9 : vector<1x32xf32> to vector<6x32xf32>
    %11 = arith.addf %8, %10 : vector<6x32xf32>
    %c0_12 = arith.constant 0 : index
    %c0_13 = arith.constant 0 : index
    %12 = vector.load %arg13[%c0_12, %c0_13] : memref<24x1xi32, #tpu.memory_space<vmem>>, vector<24x1xi32>
    %13 = tpu.iota {dimensions = array<i32: 1>} : vector<24x8xi32>
    %14 = vector.broadcast %12 : vector<24x1xi32> to vector<24x8xi32>
    %15 = arith.cmpi eq, %13, %14 : vector<24x8xi32>
    %16 = arith.extui %15 : vector<24x8xi1> to vector<24x8xi32>
    %17 = arith.sitofp %16 : vector<24x8xi32> to vector<24x8xf32>
    %c0_14 = arith.constant 0 : index
    %c0_15 = arith.constant 0 : index
    %18 = vector.load %arg14[%c0_14, %c0_15] : memref<24x1xi32, #tpu.memory_space<vmem>>, vector<24x1xi32>
    %19 = tpu.iota {dimensions = array<i32: 1>} : vector<24x8xi32>
    %20 = vector.broadcast %18 : vector<24x1xi32> to vector<24x8xi32>
    %21 = arith.cmpi eq, %19, %20 : vector<24x8xi32>
    %22 = arith.extui %21 : vector<24x8xi1> to vector<24x8xi32>
    %23 = arith.sitofp %22 : vector<24x8xi32> to vector<24x8xf32>
    %24 = arith.addf %17, %23 : vector<24x8xf32>
    %c0_16 = arith.constant 0 : index
    %c0_17 = arith.constant 0 : index
    %25 = vector.load %arg15[%c0_16, %c0_17] : memref<24x1xi32, #tpu.memory_space<vmem>>, vector<24x1xi32>
    %26 = tpu.iota {dimensions = array<i32: 1>} : vector<24x6xi32>
    %27 = vector.broadcast %25 : vector<24x1xi32> to vector<24x6xi32>
    %28 = arith.cmpi eq, %26, %27 : vector<24x6xi32>
    %29 = arith.extui %28 : vector<24x6xi1> to vector<24x6xi32>
    %30 = arith.sitofp %29 : vector<24x6xi32> to vector<24x6xf32>
    %c0_18 = arith.constant 0 : index
    %c0_19 = arith.constant 0 : index
    %31 = vector.load %arg17[%c0_18, %c0_19] : memref<16x1xi32, #tpu.memory_space<vmem>>, vector<16x1xi32>
    %32 = tpu.iota {dimensions = array<i32: 1>} : vector<16x8xi32>
    %33 = vector.broadcast %31 : vector<16x1xi32> to vector<16x8xi32>
    %34 = arith.cmpi eq, %32, %33 : vector<16x8xi32>
    %35 = arith.extui %34 : vector<16x8xi1> to vector<16x8xi32>
    %36 = arith.sitofp %35 : vector<16x8xi32> to vector<16x8xf32>
    %c0_20 = arith.constant 0 : index
    %c0_21 = arith.constant 0 : index
    %37 = vector.load %arg18[%c0_20, %c0_21] : memref<16x1xi32, #tpu.memory_space<vmem>>, vector<16x1xi32>
    %38 = tpu.iota {dimensions = array<i32: 1>} : vector<16x8xi32>
    %39 = vector.broadcast %37 : vector<16x1xi32> to vector<16x8xi32>
    %40 = arith.cmpi eq, %38, %39 : vector<16x8xi32>
    %41 = arith.extui %40 : vector<16x8xi1> to vector<16x8xi32>
    %42 = arith.sitofp %41 : vector<16x8xi32> to vector<16x8xf32>
    %c0_22 = arith.constant 0 : index
    %c0_23 = arith.constant 0 : index
    %43 = vector.load %arg16[%c0_22, %c0_23] : memref<1x24xi32, #tpu.memory_space<vmem>>, vector<1x24xi32>
    %44 = tpu.iota {dimensions = array<i32: 0>} : vector<16x24xi32>
    %45 = vector.broadcast %43 : vector<1x24xi32> to vector<16x24xi32>
    %46 = arith.cmpi eq, %44, %45 : vector<16x24xi32>
    %47 = arith.extui %46 : vector<16x24xi1> to vector<16x24xi32>
    %48 = arith.sitofp %47 : vector<16x24xi32> to vector<16x24xf32>
    %c0_24 = arith.constant 0 : index
    %c0_25 = arith.constant 0 : index
    %49 = vector.load %arg19[%c0_24, %c0_25] : memref<1x16xi32, #tpu.memory_space<vmem>>, vector<1x16xi32>
    %50 = tpu.iota {dimensions = array<i32: 0>} : vector<8x16xi32>
    %51 = vector.broadcast %49 : vector<1x16xi32> to vector<8x16xi32>
    %52 = arith.cmpi eq, %50, %51 : vector<8x16xi32>
    %53 = arith.extui %52 : vector<8x16xi1> to vector<8x16xi32>
    %54 = arith.sitofp %53 : vector<8x16xi32> to vector<8x16xf32>
    %55 = arith.truncf %24 : vector<24x8xf32> to vector<24x8xbf16>
    %56 = arith.truncf %5 : vector<8x32xf32> to vector<8x32xbf16>
    %cst_26 = arith.constant dense<0.000000e+00> : vector<24x32xf32>
    %57 = tpu.matmul %55, %56, %cst_26 {dimension_numbers = #tpu.dot_dimension_numbers<[1], [0], [0], [1], [0, 0, 1, 1], [], []>} : vector<24x8xbf16>, vector<8x32xbf16>, vector<24x32xf32> -> vector<24x32xf32>
    %58 = arith.truncf %30 : vector<24x6xf32> to vector<24x6xbf16>
    %59 = arith.truncf %11 : vector<6x32xf32> to vector<6x32xbf16>
    %cst_27 = arith.constant dense<0.000000e+00> : vector<24x32xf32>
    %60 = tpu.matmul %58, %59, %cst_27 {dimension_numbers = #tpu.dot_dimension_numbers<[1], [0], [0], [1], [0, 0, 1, 1], [], []>} : vector<24x6xbf16>, vector<6x32xbf16>, vector<24x32xf32> -> vector<24x32xf32>
    %61 = arith.addf %57, %60 : vector<24x32xf32>
    %c0_28 = arith.constant 0 : index
    %c0_29 = arith.constant 0 : index
    %62 = vector.load %arg9[%c0_28, %c0_29] : memref<1x32xf32, #tpu.memory_space<vmem>>, vector<1x32xf32>
    %63 = vector.broadcast %62 : vector<1x32xf32> to vector<24x32xf32>
    %64 = arith.addf %61, %63 : vector<24x32xf32>
    %cst_30 = arith.constant 2.000000e-01 : f32
    %65 = vector.broadcast %cst_30 : f32 to vector<24x32xf32>
    %66 = arith.mulf %64, %65 : vector<24x32xf32>
    %c0_31 = arith.constant 0 : index
    %c0_32 = arith.constant 0 : index
    %67 = vector.load %arg7[%c0_31, %c0_32] : memref<32x32xbf16, #tpu.memory_space<vmem>>, vector<32x32xbf16>
    %68 = arith.truncf %66 : vector<24x32xf32> to vector<24x32xbf16>
    %cst_33 = arith.constant dense<0.000000e+00> : vector<24x32xf32>
    %69 = tpu.matmul %68, %67, %cst_33 {dimension_numbers = #tpu.dot_dimension_numbers<[1], [0], [0], [1], [0, 0, 1, 1], [], []>} : vector<24x32xbf16>, vector<32x32xbf16>, vector<24x32xf32> -> vector<24x32xf32>
    %c0_34 = arith.constant 0 : index
    %c0_35 = arith.constant 0 : index
    %70 = vector.load %arg8[%c0_34, %c0_35] : memref<1x32xf32, #tpu.memory_space<vmem>>, vector<1x32xf32>
    %71 = vector.broadcast %70 : vector<1x32xf32> to vector<24x32xf32>
    %72 = arith.addf %69, %71 : vector<24x32xf32>
    %73 = math.tanh %72 : vector<24x32xf32>
    %74 = arith.truncf %48 : vector<16x24xf32> to vector<16x24xbf16>
    %75 = arith.truncf %73 : vector<24x32xf32> to vector<24x32xbf16>
    %cst_36 = arith.constant dense<0.000000e+00> : vector<16x32xf32>
    %76 = tpu.matmul %74, %75, %cst_36 {dimension_numbers = #tpu.dot_dimension_numbers<[1], [0], [0], [1], [0, 0, 1, 1], [], []>} : vector<16x24xbf16>, vector<24x32xbf16>, vector<16x32xf32> -> vector<16x32xf32>
    %c0_37 = arith.constant 0 : index
    %c0_38 = arith.constant 0 : index
    %77 = vector.load %arg20[%c0_37, %c0_38] : memref<16x1xf32, #tpu.memory_space<vmem>>, vector<16x1xf32>
    %78 = vector.broadcast %77 : vector<16x1xf32> to vector<16x32xf32>
    %79 = arith.mulf %76, %78 : vector<16x32xf32>
    %80 = arith.truncf %36 : vector<16x8xf32> to vector<16x8xbf16>
    %81 = arith.truncf %5 : vector<8x32xf32> to vector<8x32xbf16>
    %cst_39 = arith.constant dense<0.000000e+00> : vector<16x32xf32>
    %82 = tpu.matmul %80, %81, %cst_39 {dimension_numbers = #tpu.dot_dimension_numbers<[1], [0], [0], [1], [0, 0, 1, 1], [], []>} : vector<16x8xbf16>, vector<8x32xbf16>, vector<16x32xf32> -> vector<16x32xf32>
    %83 = arith.truncf %42 : vector<16x8xf32> to vector<16x8xbf16>
    %84 = arith.truncf %5 : vector<8x32xf32> to vector<8x32xbf16>
    %cst_40 = arith.constant dense<0.000000e+00> : vector<16x32xf32>
    %85 = tpu.matmul %83, %84, %cst_40 {dimension_numbers = #tpu.dot_dimension_numbers<[1], [0], [0], [1], [0, 0, 1, 1], [], []>} : vector<16x8xbf16>, vector<8x32xbf16>, vector<16x32xf32> -> vector<16x32xf32>
    %c0_41 = arith.constant 0 : index
    %86 = memref.load %arg0[%c0_41] : memref<2xf32, #tpu.memory_space<smem>>
    %87 = vector.broadcast %86 : f32 to vector<1x1xf32>
    %c1 = arith.constant 1 : index
    %88 = memref.load %arg0[%c1] : memref<2xf32, #tpu.memory_space<smem>>
    %89 = vector.broadcast %88 : f32 to vector<1x1xf32>
    %90 = arith.mulf %82, %85 : vector<16x32xf32>
    %cst_42 = arith.constant dense<0.000000e+00> : vector<16xf32>
    %91 = vector.multi_reduction <add>, %90, %cst_42 [1] : vector<16x32xf32> to vector<16xf32>
    %92 = vector.shape_cast %91 : vector<16xf32> to vector<16x1xf32>
    %c0_43 = arith.constant 0 : index
    %c0_44 = arith.constant 0 : index
    %93 = vector.load %arg10[%c0_43, %c0_44] : memref<1x32xf32, #tpu.memory_space<vmem>>, vector<1x32xf32>
    %94 = vector.broadcast %93 : vector<1x32xf32> to vector<16x32xf32>
    %95 = arith.mulf %94, %79 : vector<16x32xf32>
    %cst_45 = arith.constant dense<0.000000e+00> : vector<16xf32>
    %96 = vector.multi_reduction <add>, %95, %cst_45 [1] : vector<16x32xf32> to vector<16xf32>
    %97 = vector.shape_cast %96 : vector<16xf32> to vector<16x1xf32>
    %c0_46 = arith.constant 0 : index
    %c0_47 = arith.constant 0 : index
    %98 = vector.load %arg21[%c0_46, %c0_47] : memref<16x1xf32, #tpu.memory_space<vmem>>, vector<16x1xf32>
    %99 = vector.broadcast %87 : vector<1x1xf32> to vector<16x1xf32>
    %100 = arith.mulf %99, %92 : vector<16x1xf32>
    %cst_48 = arith.constant 1.000000e+00 : f32
    %101 = vector.broadcast %cst_48 : f32 to vector<1x1xf32>
    %102 = arith.subf %101, %87 : vector<1x1xf32>
    %103 = vector.broadcast %102 : vector<1x1xf32> to vector<16x1xf32>
    %104 = arith.mulf %103, %97 : vector<16x1xf32>
    %105 = arith.addf %100, %104 : vector<16x1xf32>
    %106 = arith.mulf %98, %105 : vector<16x1xf32>
    %107 = math.tanh %106 : vector<16x1xf32>
    %108 = vector.broadcast %89 : vector<1x1xf32> to vector<16x1xf32>
    %109 = arith.mulf %108, %107 : vector<16x1xf32>
    %110 = vector.shape_cast %109 : vector<16x1xf32> to vector<1x16x1xf32>
    %cst_49 = arith.constant dense<0xFF800000> : vector<1xf32>
    %111 = vector.multi_reduction <maximumf>, %110, %cst_49 [1, 2] : vector<1x16x1xf32> to vector<1xf32>
    %112 = vector.shape_cast %111 : vector<1xf32> to vector<1x1x1xf32>
    %113 = vector.extract %112[0, 0, 0] : f32 from vector<1x1x1xf32>
    %114 = vector.broadcast %113 : f32 to vector<16x1xf32>
    %115 = arith.subf %109, %114 : vector<16x1xf32>
    %116 = math.exp %115 : vector<16x1xf32>
    %cst_50 = arith.constant 0.000000e+00 : f32
    %117 = vector.broadcast %cst_50 : f32 to vector<16x61xf32>
    %118 = vector.broadcast %116 : vector<16x1xf32> to vector<16x32xf32>
    %119 = arith.mulf %118, %82 : vector<16x32xf32>
    %120 = vector.broadcast %116 : vector<16x1xf32> to vector<16x32xf32>
    %121 = arith.mulf %120, %79 : vector<16x32xf32>
    %c0_51 = arith.constant 0 : index
    %c0_52 = arith.constant 0 : index
    %122 = vector.load %arg22[%c0_51, %c0_52] : memref<16x1xf32, #tpu.memory_space<vmem>>, vector<16x1xf32>
    %123 = arith.mulf %122, %109 : vector<16x1xf32>
    %c0_53 = arith.constant 0 : index
    %c0_54 = arith.constant 0 : index
    %124 = vector.load %arg23[%c0_53, %c0_54] : memref<16x1xf32, #tpu.memory_space<vmem>>, vector<16x1xf32>
    %125 = arith.mulf %124, %109 : vector<16x1xf32>
    %126 = tpu.concatenate %119, %121, %116, %123, %125, %117 in 1 : vector<16x32xf32>, vector<16x32xf32>, vector<16x1xf32>, vector<16x1xf32>, vector<16x1xf32>, vector<16x61xf32> -> vector<16x128xf32>
    %127 = arith.truncf %54 : vector<8x16xf32> to vector<8x16xbf16>
    %128 = arith.truncf %126 : vector<16x128xf32> to vector<16x128xbf16>
    %cst_55 = arith.constant dense<0.000000e+00> : vector<8x128xf32>
    %129 = tpu.matmul %127, %128, %cst_55 {dimension_numbers = #tpu.dot_dimension_numbers<[1], [0], [0], [1], [0, 0, 1, 1], [], []>} : vector<8x16xbf16>, vector<16x128xbf16>, vector<8x128xf32> -> vector<8x128xf32>
    %130 = vector.extract_strided_slice %129 {offsets = [0, 0], sizes = [8, 64], strides = [1, 1]} : vector<8x128xf32> to vector<8x64xf32>
    %131 = vector.extract_strided_slice %129 {offsets = [0, 64], sizes = [8, 1], strides = [1, 1]} : vector<8x128xf32> to vector<8x1xf32>
    %132 = vector.extract_strided_slice %129 {offsets = [0, 65], sizes = [8, 1], strides = [1, 1]} : vector<8x128xf32> to vector<8x1xf32>
    %133 = vector.extract_strided_slice %129 {offsets = [0, 66], sizes = [8, 1], strides = [1, 1]} : vector<8x128xf32> to vector<8x1xf32>
    %cst_56 = arith.constant 0.000000e+00 : f32
    %134 = vector.broadcast %cst_56 : f32 to vector<8x1xf32>
    %135 = arith.cmpf ogt, %131, %134 : vector<8x1xf32>
    %cst_57 = arith.constant 1.000000e+00 : f32
    %136 = vector.broadcast %cst_57 : f32 to vector<8x1xf32>
    %137 = arith.select %135, %131, %136 : vector<8x1xi1>, vector<8x1xf32>
    %c0_58 = arith.constant 0 : index
    %c0_59 = arith.constant 0 : index
    %138 = vector.load %arg11[%c0_58, %c0_59] : memref<64x32xbf16, #tpu.memory_space<vmem>>, vector<64x32xbf16>
    %139 = arith.truncf %130 : vector<8x64xf32> to vector<8x64xbf16>
    %cst_60 = arith.constant dense<0.000000e+00> : vector<8x32xf32>
    %140 = tpu.matmul %139, %138, %cst_60 {dimension_numbers = #tpu.dot_dimension_numbers<[1], [0], [0], [1], [0, 0, 1, 1], [], []>} : vector<8x64xbf16>, vector<64x32xbf16>, vector<8x32xf32> -> vector<8x32xf32>
    %141 = vector.broadcast %137 : vector<8x1xf32> to vector<8x32xf32>
    %142 = arith.divf %140, %141 : vector<8x32xf32>
    %c0_61 = arith.constant 0 : index
    %c0_62 = arith.constant 0 : index
    %143 = vector.load %arg12[%c0_61, %c0_62] : memref<1x32xf32, #tpu.memory_space<vmem>>, vector<1x32xf32>
    %144 = vector.broadcast %143 : vector<1x32xf32> to vector<8x32xf32>
    %145 = arith.addf %142, %144 : vector<8x32xf32>
    %146 = arith.addf %145, %5 : vector<8x32xf32>
    %cst_63 = arith.constant 0.000000e+00 : f32
    %147 = vector.broadcast %cst_63 : f32 to vector<8x32xf32>
    %148 = arith.maximumf %146, %147 : vector<8x32xf32>
    %cst_64 = arith.constant 0.000000e+00 : f32
    %149 = vector.broadcast %cst_64 : f32 to vector<8x94xf32>
    %150 = tpu.concatenate %148, %132, %133, %149 in 1 : vector<8x32xf32>, vector<8x1xf32>, vector<8x1xf32>, vector<8x94xf32> -> vector<8x128xf32>
    %c0_65 = arith.constant 0 : index
    %c0_66 = arith.constant 0 : index
    %151 = vector.load %arg24[%c0_65, %c0_66] : memref<8x128xf32, #tpu.memory_space<vmem>>, vector<8x128xf32>
    tpu.vector_store %arg24[%c0_65, %c0_66], %150 {strides = array<i32>} : memref<8x128xf32, #tpu.memory_space<vmem>>, vector<8x128xf32>,
    return
  }
}

</mosaic_0001>

<llo_original>
// kernel: tpu_custom_call.1
$region0: #{tpu_custom_call.1}
  #allocation0 [shape = 'u32[]', space=smem, size = 0x4, offset = 0x4, fixed_abs, tag = 'smem constant byte address 0x4 - core index']
  #allocation1 [shape = 'u32[144,128]{1,0:T(1,128)}', space=vmem, size = 0x12000, scoped, tag = 'internal scratch']
  %s0 = inlined_call_operand.vmem [shape: f32[2], index: 0, kind: input, shape index: {}]
  %s1 = inlined_call_operand.vmem [shape: bf16[8,16], index: 1, kind: input, shape index: {}]
  %s2 = inlined_call_operand.vmem [shape: bf16[6,12], index: 2, kind: input, shape index: {}]
  %s3 = inlined_call_operand.vmem [shape: bf16[16,32], index: 3, kind: input, shape index: {}]
  %s4 = inlined_call_operand.vmem [shape: f32[1,32], index: 4, kind: input, shape index: {}]
  %s5 = inlined_call_operand.vmem [shape: bf16[12,32], index: 5, kind: input, shape index: {}]
  %s6 = inlined_call_operand.vmem [shape: f32[1,32], index: 6, kind: input, shape index: {}]
  %s7 = inlined_call_operand.vmem [shape: bf16[32,32], index: 7, kind: input, shape index: {}]
  %s8 = inlined_call_operand.vmem [shape: f32[1,32], index: 8, kind: input, shape index: {}]
  %s9 = inlined_call_operand.vmem [shape: f32[1,32], index: 9, kind: input, shape index: {}]
  %s10 = inlined_call_operand.vmem [shape: f32[1,32], index: 10, kind: input, shape index: {}]
  %s11 = inlined_call_operand.vmem [shape: bf16[64,32], index: 11, kind: input, shape index: {}]
  %s12 = inlined_call_operand.vmem [shape: f32[1,32], index: 12, kind: input, shape index: {}]
  %s13 = inlined_call_operand.vmem [shape: s32[24,1], index: 13, kind: input, shape index: {}]
  %s14 = inlined_call_operand.vmem [shape: s32[24,1], index: 14, kind: input, shape index: {}]
  %s15 = inlined_call_operand.vmem [shape: s32[24,1], index: 15, kind: input, shape index: {}]
  %s16 = inlined_call_operand.vmem [shape: s32[1,24], index: 16, kind: input, shape index: {}]
  %s17 = inlined_call_operand.vmem [shape: s32[16,1], index: 17, kind: input, shape index: {}]
  %s18 = inlined_call_operand.vmem [shape: s32[16,1], index: 18, kind: input, shape index: {}]
  %s19 = inlined_call_operand.vmem [shape: s32[1,16], index: 19, kind: input, shape index: {}]
  %s20 = inlined_call_operand.vmem [shape: f32[16,1], index: 20, kind: input, shape index: {}]
  %s21 = inlined_call_operand.vmem [shape: f32[16,1], index: 21, kind: input, shape index: {}]
  %s22 = inlined_call_operand.vmem [shape: f32[16,1], index: 22, kind: input, shape index: {}]
  %s23 = inlined_call_operand.vmem [shape: f32[16,1], index: 23, kind: input, shape index: {}]
  %s24 = inlined_call_operand.hbm [shape: f32[8,128], index: 24, kind: output, shape index: {}]
  %s25 = sld [smem:[#allocation0]]
  $region110: #{tpu_custom_call.1} parent=0
    _
  %s27 = ssub.s32 1, %s25
  %s28 = scalar_select 0, %s27, %s25
  $region1: #{tpu_custom_call.1} parent=0
    #allocation2 [shape = 'u8[512]{0}', space=smem, size = 0x200, scoped, tag = 'input window, operand 0, single buffered']
    #allocation3 [shape = 's32[1]{0}', space=sflag, size = 0x4, scoped, tag = 'scoped memory for tpu_custom_call.1']
    #allocation4 [shape = 's32[1]{0}', space=sflag, size = 0x4, scoped, tag = 'scoped memory for tpu_custom_call.1']
    #allocation5 [shape = 'u8[4096]{0}', space=vmem, size = 0x1000, scoped, tag = 'output window, operand 0, single buffered']
    %29 = vsyncpa [#allocation4], 0
    %30 = vsyncpa [#allocation3], 0
    // Predicated region
    $region2: #{tpu_custom_call.1} parent=1 // pred_check
      _
    $region3: #{tpu_custom_call.1} parent=1 // pred_check_branch
      %32 = sbr.rel (0) target = $region5
    $region4: #{tpu_custom_call.1} parent=1 // pred_region
      %s34 = ssub.s32 16, 16
      %35 = vsyncadd [#allocation4], %s34
      %s37 = sshll.u32 %s0, 4
      %s38 = int_to_ptr.vmem [resolvable:$true] %s37
      %40 = dma.vmem_to_smem %s38, 16, [#allocation2], [#allocation4]
    $region5: #{tpu_custom_call.1} parent=1 // pred_fallthru
      _
    // Predicated region
    $region6: #{tpu_custom_call.1} parent=1 // pred_check
      _
    $region7: #{tpu_custom_call.1} parent=1 // pred_check_branch
      %42 = sbr.rel (0) target = $region9
    $region8: #{tpu_custom_call.1} parent=1 // pred_region
      _
    $region9: #{tpu_custom_call.1} parent=1 // pred_fallthru
      _
    // Predicated region
    $region10: #{tpu_custom_call.1} parent=1 // pred_check
      _
    $region11: #{tpu_custom_call.1} parent=1 // pred_check_branch
      %44 = sbr.rel (0) target = $region13
    $region12: #{tpu_custom_call.1} parent=1 // pred_region
      _
    $region13: #{tpu_custom_call.1} parent=1 // pred_fallthru
      _
    // Predicated region
    $region14: #{tpu_custom_call.1} parent=1 // pred_check
      _
    $region15: #{tpu_custom_call.1} parent=1 // pred_check_branch
      %46 = sbr.rel (0) target = $region17
    $region16: #{tpu_custom_call.1} parent=1 // pred_region
      _
    $region17: #{tpu_custom_call.1} parent=1 // pred_fallthru
      _
    // Predicated region
    $region18: #{tpu_custom_call.1} parent=1 // pred_check
      _
    $region19: #{tpu_custom_call.1} parent=1 // pred_check_branch
      %48 = sbr.rel (0) target = $region21
    $region20: #{tpu_custom_call.1} parent=1 // pred_region
      _
    $region21: #{tpu_custom_call.1} parent=1 // pred_fallthru
      _
    // Predicated region
    $region22: #{tpu_custom_call.1} parent=1 // pred_check
      _
    $region23: #{tpu_custom_call.1} parent=1 // pred_check_branch
      %50 = sbr.rel (0) target = $region25
    $region24: #{tpu_custom_call.1} parent=1 // pred_region
      _
    $region25: #{tpu_custom_call.1} parent=1 // pred_fallthru
      _
    // Predicated region
    $region26: #{tpu_custom_call.1} parent=1 // pred_check
      _
    $region27: #{tpu_custom_call.1} parent=1 // pred_check_branch
      %52 = sbr.rel (0) target = $region29
    $region28: #{tpu_custom_call.1} parent=1 // pred_region
      _
    $region29: #{tpu_custom_call.1} parent=1 // pred_fallthru
      _
    // Predicated region
    $region30: #{tpu_custom_call.1} parent=1 // pred_check
      _
    $region31: #{tpu_custom_call.1} parent=1 // pred_check_branch
      %54 = sbr.rel (0) target = $region33
    $region32: #{tpu_custom_call.1} parent=1 // pred_region
      _
    $region33: #{tpu_custom_call.1} parent=1 // pred_fallthru
      _
    // Predicated region
    $region34: #{tpu_custom_call.1} parent=1 // pred_check
      _
    $region35: #{tpu_custom_call.1} parent=1 // pred_check_branch
      %56 = sbr.rel (0) target = $region37
    $region36: #{tpu_custom_call.1} parent=1 // pred_region
      _
    $region37: #{tpu_custom_call.1} parent=1 // pred_fallthru
      _
    // Predicated region
    $region38: #{tpu_custom_call.1} parent=1 // pred_check
      _
    $region39: #{tpu_custom_call.1} parent=1 // pred_check_branch
      %58 = sbr.rel (0) target = $region41
    $region40: #{tpu_custom_call.1} parent=1 // pred_region
      _
    $region41: #{tpu_custom_call.1} parent=1 // pred_fallthru
      _
    // Predicated region
    $region42: #{tpu_custom_call.1} parent=1 // pred_check
      _
    $region43: #{tpu_custom_call.1} parent=1 // pred_check_branch
      %60 = sbr.rel (0) target = $region45
    $region44: #{tpu_custom_call.1} parent=1 // pred_region
      _
    $region45: #{tpu_custom_call.1} parent=1 // pred_fallthru
      _
    // Predicated region
    $region46: #{tpu_custom_call.1} parent=1 // pred_check
      _
    $region47: #{tpu_custom_call.1} parent=1 // pred_check_branch
      %62 = sbr.rel (0) target = $region49
    $region48: #{tpu_custom_call.1} parent=1 // pred_region
      _
    $region49: #{tpu_custom_call.1} parent=1 // pred_fallthru
      _
    // Predicated region
    $region50: #{tpu_custom_call.1} parent=1 // pred_check
      _
    $region51: #{tpu_custom_call.1} parent=1 // pred_check_branch
      %64 = sbr.rel (0) target = $region53
    $region52: #{tpu_custom_call.1} parent=1 // pred_region
      _
    $region53: #{tpu_custom_call.1} parent=1 // pred_fallthru
      _
    // Predicated region
    $region54: #{tpu_custom_call.1} parent=1 // pred_check
      _
    $region55: #{tpu_custom_call.1} parent=1 // pred_check_branch
      %66 = sbr.rel (0) target = $region57
    $region56: #{tpu_custom_call.1} parent=1 // pred_region
      _
    $region57: #{tpu_custom_call.1} parent=1 // pred_fallthru
      _
    // Predicated region
    $region58: #{tpu_custom_call.1} parent=1 // pred_check
      _
    $region59: #{tpu_custom_call.1} parent=1 // pred_check_branch
      %68 = sbr.rel (0) target = $region61
    $region60: #{tpu_custom_call.1} parent=1 // pred_region
      _
    $region61: #{tpu_custom_call.1} parent=1 // pred_fallthru
      _
    // Predicated region
    $region62: #{tpu_custom_call.1} parent=1 // pred_check
      _
    $region63: #{tpu_custom_call.1} parent=1 // pred_check_branch
      %70 = sbr.rel (0) target = $region65
    $region64: #{tpu_custom_call.1} parent=1 // pred_region
      _
    $region65: #{tpu_custom_call.1} parent=1 // pred_fallthru
      _
    // Predicated region
    $region66: #{tpu_custom_call.1} parent=1 // pred_check
      _
    $region67: #{tpu_custom_call.1} parent=1 // pred_check_branch
      %72 = sbr.rel (0) target = $region69
    $region68: #{tpu_custom_call.1} parent=1 // pred_region
      _
    $region69: #{tpu_custom_call.1} parent=1 // pred_fallthru
      _
    // Predicated region
    $region70: #{tpu_custom_call.1} parent=1 // pred_check
      _
    $region71: #{tpu_custom_call.1} parent=1 // pred_check_branch
      %74 = sbr.rel (0) target = $region73
    $region72: #{tpu_custom_call.1} parent=1 // pred_region
      _
    $region73: #{tpu_custom_call.1} parent=1 // pred_fallthru
      _
    // Predicated region
    $region74: #{tpu_custom_call.1} parent=1 // pred_check
      _
    $region75: #{tpu_custom_call.1} parent=1 // pred_check_branch
      %76 = sbr.rel (0) target = $region77
    $region76: #{tpu_custom_call.1} parent=1 // pred_region
      _
    $region77: #{tpu_custom_call.1} parent=1 // pred_fallthru
      _
    // Predicated region
    $region78: #{tpu_custom_call.1} parent=1 // pred_check
      _
    $region79: #{tpu_custom_call.1} parent=1 // pred_check_branch
      %78 = sbr.rel (0) target = $region81
    $region80: #{tpu_custom_call.1} parent=1 // pred_region
      _
    $region81: #{tpu_custom_call.1} parent=1 // pred_fallthru
      _
    // Predicated region
    $region82: #{tpu_custom_call.1} parent=1 // pred_check
      _
    $region83: #{tpu_custom_call.1} parent=1 // pred_check_branch
      %80 = sbr.rel (0) target = $region85
    $region84: #{tpu_custom_call.1} parent=1 // pred_region
      _
    $region85: #{tpu_custom_call.1} parent=1 // pred_fallthru
      _
    // Predicated region
    $region86: #{tpu_custom_call.1} parent=1 // pred_check
      _
    $region87: #{tpu_custom_call.1} parent=1 // pred_check_branch
      %82 = sbr.rel (0) target = $region89
    $region88: #{tpu_custom_call.1} parent=1 // pred_region
      _
    $region89: #{tpu_custom_call.1} parent=1 // pred_fallthru
      _
    // Predicated region
    $region90: #{tpu_custom_call.1} parent=1 // pred_check
      _
    $region91: #{tpu_custom_call.1} parent=1 // pred_check_branch
      %84 = sbr.rel (0) target = $region93
    $region92: #{tpu_custom_call.1} parent=1 // pred_region
      _
    $region93: #{tpu_custom_call.1} parent=1 // pred_fallthru
      _
    // Predicated region
    $region94: #{tpu_custom_call.1} parent=1 // pred_check
      _
    $region95: #{tpu_custom_call.1} parent=1 // pred_check_branch
      %86 = sbr.rel (0) target = $region97
    $region96: #{tpu_custom_call.1} parent=1 // pred_region
      _
    $region97: #{tpu_custom_call.1} parent=1 // pred_fallthru
      _
    // Predicated region
    $region98: #{tpu_custom_call.1} parent=1 // pred_check
      _
    $region99: #{tpu_custom_call.1} parent=1 // pred_check_branch
      %88 = sbr.rel (0) target = $region101
    $region100: #{tpu_custom_call.1} parent=1 // pred_region
      %89 = dma.done [#allocation4], 16
    $region101: #{tpu_custom_call.1} parent=1 // pred_fallthru
      _
    %90 = sfence
    %v92 = vld [vmem:[%s1] sm:$0xf]
    %v93 = vld [vmem:[%s3] sm:$0xf]
    %v94 = vld [vmem:[%s3 + $0x4] sm:$0xf]
    %v95 = vld [vmem:[%s4] sm:$0x1]
    %v97 = vlaneseq
    %v98 = vshrl.u32 %v97, 7
    %v99 = vsub.s32 0, %v98
    %v100 = vrot.slane %v95, %v99
    %v104 = vunpack.c.l.b16 %v93
    %v105 = vunpack.c.l.b16 %v94
    %v106 = vpack.c.b16 %v105, %v104
    %vm108 = vcmask 130048
    %v110 = vsel %vm108, %v92, 0
    %112 = vmatprep.subr.bf16.mxu0 0
    %113 = vmatpush1.bf16.msra.mxu0 0
    %114 = vmatprep.subr.bf16.mxu0 0
    %115 = vmatpush1.bf16.msra.mxu0 0
    %116 = vmatprep.subr.bf16.mxu0 0
    %117 = vmatpush1.bf16.msra.mxu0 0
    %118 = vmatprep.subr.bf16.mxu0 0
    %119 = vmatpush1.bf16.msra.mxu0 0
    %120 = vmatprep.subr.bf16.mxu0 0
    %121 = vmatpush1.bf16.msra.mxu0 0
    %122 = vmatprep.subr.bf16.mxu0 0
    %123 = vmatpush1.bf16.msra.mxu0 0
    %124 = vmatprep.subr.bf16.mxu0 0
    %125 = vmatpush1.bf16.msra.mxu0 0
    %126 = vmatprep.subr.bf16.mxu0 0
    %127 = vmatpush1.bf16.msra.mxu0 %v106
    %128 = vmatprep.subr.bf16.mxu0 0
    %129 = vmatpush2.bf16.msra.mxu0 0
    %130 = vmatprep.subr.bf16.mxu0 0
    %131 = vmatpush2.bf16.msra.mxu0 0
    %132 = vmatprep.subr.bf16.mxu0 0
    %133 = vmatpush2.bf16.msra.mxu0 0
    %134 = vmatprep.subr.bf16.mxu0 0
    %135 = vmatpush2.bf16.msra.mxu0 0
    %136 = vmatprep.subr.bf16.mxu0 0
    %137 = vmatpush2.bf16.msra.mxu0 0
    %138 = vmatprep.subr.bf16.mxu0 0
    %139 = vmatpush2.bf16.msra.mxu0 0
    %140 = vmatprep.subr.bf16.mxu0 0
    %141 = vmatpush2.bf16.msra.mxu0 0
    %142 = vmatprep.subr.bf16.mxu0 0
    %143 = vmatpush2.bf16.msra.mxu0 0
    %144 = vmatprep.mubr.bf16.mxu0 0
    %145 = vmatmul.mubr.bf16.gmra.mxu0 %v110
    %v146 = vpop.f32.mrf.mxu0
    %v147 = vadd.f32 %v100, %v146
    %v148 = vpop.f32.mrf.mxu0
    %v149 = vpop.f32.mrf.mxu0
    %v150 = vpop.f32.mrf.mxu0
    %151 = vdwg.mxu0
    %v152 = vld [vmem:[%s2] sm:$0x7]
    %v153 = vld [vmem:[%s5] sm:$0xf]
    %v154 = vld [vmem:[%s5 + $0x4] sm:$0x3]
    %v155 = vld [vmem:[%s6] sm:$0x1]
    %v157 = vlaneseq
    %v158 = vshrl.u32 %v157, 7
    %v159 = vsub.s32 0, %v158
    %v160 = vrot.slane %v155, %v159
    %v164 = vunpack.c.l.b16 %v153
    %v165 = vunpack.c.l.b16 %v154
    %v166 = vpack.c.b16 %v165, %v164
    %vm167 = vcmask 97280
    %v169 = vsel %vm167, %v152, 0
    %vm171 = vcmask 1045504
    %v173 = vsel %vm171, %v166, 0
    %175 = vmatprep.subr.bf16.mxu0 0
    %176 = vmatpush1.bf16.msra.mxu0 0
    %177 = vmatprep.subr.bf16.mxu0 0
    %178 = vmatpush1.bf16.msra.mxu0 0
    %179 = vmatprep.subr.bf16.mxu0 0
    %180 = vmatpush1.bf16.msra.mxu0 0
    %181 = vmatprep.subr.bf16.mxu0 0
    %182 = vmatpush1.bf16.msra.mxu0 0
    %183 = vmatprep.subr.bf16.mxu0 0
    %184 = vmatpush1.bf16.msra.mxu0 0
    %185 = vmatprep.subr.bf16.mxu0 0
    %186 = vmatpush1.bf16.msra.mxu0 0
    %187 = vmatprep.subr.bf16.mxu0 0
    %188 = vmatpush1.bf16.msra.mxu0 0
    %189 = vmatprep.subr.bf16.mxu0 0
    %190 = vmatpush1.bf16.msra.mxu0 %v173
    %191 = vmatprep.subr.bf16.mxu0 0
    %192 = vmatpush2.bf16.msra.mxu0 0
    %193 = vmatprep.subr.bf16.mxu0 0
    %194 = vmatpush2.bf16.msra.mxu0 0
    %195 = vmatprep.subr.bf16.mxu0 0
    %196 = vmatpush2.bf16.msra.mxu0 0
    %197 = vmatprep.subr.bf16.mxu0 0
    %198 = vmatpush2.bf16.msra.mxu0 0
    %199 = vmatprep.subr.bf16.mxu0 0
    %200 = vmatpush2.bf16.msra.mxu0 0
    %201 = vmatprep.subr.bf16.mxu0 0
    %202 = vmatpush2.bf16.msra.mxu0 0
    %203 = vmatprep.subr.bf16.mxu0 0
    %204 = vmatpush2.bf16.msra.mxu0 0
    %205 = vmatprep.subr.bf16.mxu0 0
    %206 = vmatpush2.bf16.msra.mxu0 0
    %207 = vmatprep.mubr.bf16.mxu0 0
    %208 = vmatmul.mubr.bf16.gmra.mxu0 %v169
    %v209 = vpop.f32.mrf.mxu0
    %v210 = vadd.f32 %v160, %v209
    %v211 = vpop.f32.mrf.mxu0
    %v212 = vpop.f32.mrf.mxu0
    %v213 = vpop.f32.mrf.mxu0
    %214 = vdwg.mxu0
    %v215 = vld [vmem:[%s13] sm:$0xff]
    %v216 = vld [vmem:[%s13 + $0x8] sm:$0xff]
    %v217 = vld [vmem:[%s13 + $0x10] sm:$0xff]
    %v218 = vlaneseq
    %v219 = vand.u32 %v218, 127
    %220 = vset.pattern.permute.xlu0 0
    %221 = vperm.xlu0 %220, %v215
    %v222 = vpop.permute.xlu0 %221
    %223 = vset.pattern.permute.xlu0 0
    %224 = vperm.xlu0 %223, %v216
    %v225 = vpop.permute.xlu0 %224
    %226 = vset.pattern.permute.xlu0 0
    %227 = vperm.xlu0 %226, %v217
    %v228 = vpop.permute.xlu0 %227
    %vm229 = vcmp.eq.s32.totalorder %v219, %v222
    %vm230 = vcmp.eq.s32.totalorder %v219, %v225
    %vm231 = vcmp.eq.s32.totalorder %v219, %v228
    %v232 = vsel %vm229, 1, 0
    %v233 = vsel %vm230, 1, 0
    %v234 = vsel %vm231, 1, 0
    %v235 = vcvt.s32.f32 %v232
    %v236 = vcvt.s32.f32 %v233
    %v237 = vcvt.s32.f32 %v234
    %v238 = vld [vmem:[%s14] sm:$0xff]
    %v239 = vld [vmem:[%s14 + $0x8] sm:$0xff]
    %v240 = vld [vmem:[%s14 + $0x10] sm:$0xff]
    %241 = vset.pattern.permute.xlu0 0
    %242 = vperm.xlu0 %241, %v238
    %v243 = vpop.permute.xlu0 %242
    %244 = vset.pattern.permute.xlu0 0
    %245 = vperm.xlu0 %244, %v239
    %v246 = vpop.permute.xlu0 %245
    %247 = vset.pattern.permute.xlu0 0
    %248 = vperm.xlu0 %247, %v240
    %v249 = vpop.permute.xlu0 %248
    %vm250 = vcmp.eq.s32.totalorder %v219, %v243
    %vm251 = vcmp.eq.s32.totalorder %v219, %v246
    %vm252 = vcmp.eq.s32.totalorder %v219, %v249
    %v253 = vsel %vm250, 1, 0
    %v254 = vsel %vm251, 1, 0
    %v255 = vsel %vm252, 1, 0
    %v256 = vcvt.s32.f32 %v253
    %v257 = vcvt.s32.f32 %v254
    %v258 = vcvt.s32.f32 %v255
    %v259 = vadd.f32 %v235, %v256
    %v260 = vadd.f32 %v236, %v257
    %v261 = vadd.f32 %v237, %v258
    %v262 = vld [vmem:[%s15] sm:$0xff]
    %v263 = vld [vmem:[%s15 + $0x8] sm:$0xff]
    %v264 = vld [vmem:[%s15 + $0x10] sm:$0xff]
    %265 = vset.pattern.permute.xlu0 0
    %266 = vperm.xlu0 %265, %v262
    %v267 = vpop.permute.xlu0 %266
    %268 = vset.pattern.permute.xlu0 0
    %269 = vperm.xlu0 %268, %v263
    %v270 = vpop.permute.xlu0 %269
    %271 = vset.pattern.permute.xlu0 0
    %272 = vperm.xlu0 %271, %v264
    %v273 = vpop.permute.xlu0 %272
    %vm274 = vcmp.eq.s32.totalorder %v219, %v267
    %vm275 = vcmp.eq.s32.totalorder %v219, %v270
    %vm276 = vcmp.eq.s32.totalorder %v219, %v273
    %v277 = vld [vmem:[%s17] sm:$0xff]
    %v278 = vld [vmem:[%s17 + $0x8] sm:$0xff]
    %279 = vset.pattern.permute.xlu0 0
    %280 = vperm.xlu0 %279, %v277
    %v281 = vpop.permute.xlu0 %280
    %282 = vset.pattern.permute.xlu0 0
    %283 = vperm.xlu0 %282, %v278
    %v284 = vpop.permute.xlu0 %283
    %vm285 = vcmp.eq.s32.totalorder %v219, %v281
    %vm286 = vcmp.eq.s32.totalorder %v219, %v284
    %v287 = vld [vmem:[%s18] sm:$0xff]
    %v288 = vld [vmem:[%s18 + $0x8] sm:$0xff]
    %289 = vset.pattern.permute.xlu0 0
    %290 = vperm.xlu0 %289, %v287
    %v291 = vpop.permute.xlu0 %290
    %292 = vset.pattern.permute.xlu0 0
    %293 = vperm.xlu0 %292, %v288
    %v294 = vpop.permute.xlu0 %293
    %vm295 = vcmp.eq.s32.totalorder %v219, %v291
    %vm296 = vcmp.eq.s32.totalorder %v219, %v294
    %v297 = vld [vmem:[%s16] sm:$0x1]
    %v298 = vlaneseq
    %v299 = vshrl.u32 %v298, 7
    %v300 = vadd.s32 %v299, 8
    %v301 = vlaneseq
    %v302 = vshrl.u32 %v301, 7
    %v303 = vsub.s32 0, %v302
    %v304 = vrot.slane %v297, %v303
    %vm305 = vcmp.eq.s32.totalorder %v299, %v304
    %vm306 = vcmp.eq.s32.totalorder %v300, %v304
    %v307 = vld [vmem:[%s19] sm:$0x1]
    %v308 = vlaneseq
    %v309 = vshrl.u32 %v308, 7
    %v310 = vsub.s32 0, %v309
    %v311 = vrot.slane %v307, %v310
    %vm312 = vcmp.eq.s32.totalorder %v299, %v311
    %v313 = vpack.c.bf16 %v260, %v259
    %v314 = vpack.c.bf16 %v261, %v261
    %v315 = vpack.c.bf16 %v147, %v147
    %v316 = vsel %vm274, 1, 0
    %v317 = vsel %vm275, 1, 0
    %v318 = vsel %vm276, 1, 0
    %v319 = vcvt.s32.f32 %v316
    %v320 = vcvt.s32.f32 %v317
    %v321 = vcvt.s32.f32 %v318
    %v322 = vpack.c.bf16 %v320, %v319
    %v323 = vpack.c.bf16 %v321, %v321
    %v324 = vpack.c.bf16 %v210, %v210
    %vm325 = vcmask 48128
    %v327 = vsel %vm325, %v322, 0
    %v330 = vsel %vm325, %v323, 0
    %vm332 = vcmask 1042432
    %v334 = vsel %vm332, %v324, 0
    %336 = vmatprep.subr.bf16.mxu0 0
    %337 = vmatpush1.bf16.msra.mxu0 0
    %338 = vmatprep.subr.bf16.mxu0 0
    %339 = vmatpush1.bf16.msra.mxu0 0
    %340 = vmatprep.subr.bf16.mxu0 0
    %341 = vmatpush1.bf16.msra.mxu0 0
    %342 = vmatprep.subr.bf16.mxu0 0
    %343 = vmatpush1.bf16.msra.mxu0 0
    %344 = vmatprep.subr.bf16.mxu0 0
    %345 = vmatpush1.bf16.msra.mxu0 0
    %346 = vmatprep.subr.bf16.mxu0 0
    %347 = vmatpush1.bf16.msra.mxu0 0
    %348 = vmatprep.subr.bf16.mxu0 0
    %349 = vmatpush1.bf16.msra.mxu0 0
    %350 = vmatprep.subr.bf16.mxu0 0
    %351 = vmatpush1.bf16.msra.mxu0 %v334
    %352 = vmatprep.subr.bf16.mxu0 0
    %353 = vmatpush2.bf16.msra.mxu0 0
    %354 = vmatprep.subr.bf16.mxu0 0
    %355 = vmatpush2.bf16.msra.mxu0 0
    %356 = vmatprep.subr.bf16.mxu0 0
    %357 = vmatpush2.bf16.msra.mxu0 0
    %358 = vmatprep.subr.bf16.mxu0 0
    %359 = vmatpush2.bf16.msra.mxu0 0
    %360 = vmatprep.subr.bf16.mxu0 0
    %361 = vmatpush2.bf16.msra.mxu0 0
    %362 = vmatprep.subr.bf16.mxu0 0
    %363 = vmatpush2.bf16.msra.mxu0 0
    %364 = vmatprep.subr.bf16.mxu0 0
    %365 = vmatpush2.bf16.msra.mxu0 0
    %366 = vmatprep.subr.bf16.mxu0 0
    %367 = vmatpush2.bf16.msra.mxu0 0
    %368 = vmatprep.mubr.bf16.mxu0 0
    %369 = vmatmul.mubr.bf16.gmra.mxu0 %v327
    %v370 = vpop.f32.mrf.mxu0
    %v371 = vadd.f32 0.0, %v370
    %v372 = vpop.f32.mrf.mxu0
    %v373 = vpop.f32.mrf.mxu0
    %v374 = vadd.f32 0.0, %v373
    %v375 = vpop.f32.mrf.mxu0
    %376 = vmatprep.mubr.bf16.mxu0 0
    %377 = vmatmul.mubr.bf16.gmra.mxu0 %v330
    %v378 = vpop.f32.mrf.mxu0
    %v379 = vadd.f32 0.0, %v378
    %v380 = vpop.f32.mrf.mxu0
    %v381 = vpop.f32.mrf.mxu0
    %v382 = vpop.f32.mrf.mxu0
    %383 = vdwg.mxu0
    %vm384 = vcmask 64512
    %v386 = vsel %vm384, %v313, 0
    %v389 = vsel %vm384, %v314, 0
    %vm391 = vcmask 1043456
    %v393 = vsel %vm391, %v315, 0
    %395 = vmatprep.subr.bf16.mxu0 0
    %396 = vmatpush1.bf16.msra.mxu0 0
    %397 = vmatprep.subr.bf16.mxu0 0
    %398 = vmatpush1.bf16.msra.mxu0 0
    %399 = vmatprep.subr.bf16.mxu0 0
    %400 = vmatpush1.bf16.msra.mxu0 0
    %401 = vmatprep.subr.bf16.mxu0 0
    %402 = vmatpush1.bf16.msra.mxu0 0
    %403 = vmatprep.subr.bf16.mxu0 0
    %404 = vmatpush1.bf16.msra.mxu0 0
    %405 = vmatprep.subr.bf16.mxu0 0
    %406 = vmatpush1.bf16.msra.mxu0 0
    %407 = vmatprep.subr.bf16.mxu0 0
    %408 = vmatpush1.bf16.msra.mxu0 0
    %409 = vmatprep.subr.bf16.mxu0 0
    %410 = vmatpush1.bf16.msra.mxu0 %v393
    %411 = vmatprep.subr.bf16.mxu0 0
    %412 = vmatpush2.bf16.msra.mxu0 0
    %413 = vmatprep.subr.bf16.mxu0 0
    %414 = vmatpush2.bf16.msra.mxu0 0
    %415 = vmatprep.subr.bf16.mxu0 0
    %416 = vmatpush2.bf16.msra.mxu0 0
    %417 = vmatprep.subr.bf16.mxu0 0
    %418 = vmatpush2.bf16.msra.mxu0 0
    %419 = vmatprep.subr.bf16.mxu0 0
    %420 = vmatpush2.bf16.msra.mxu0 0
    %421 = vmatprep.subr.bf16.mxu0 0
    %422 = vmatpush2.bf16.msra.mxu0 0
    %423 = vmatprep.subr.bf16.mxu0 0
    %424 = vmatpush2.bf16.msra.mxu0 0
    %425 = vmatprep.subr.bf16.mxu0 0
    %426 = vmatpush2.bf16.msra.mxu0 0
    %427 = vmatprep.mubr.bf16.mxu0 0
    %428 = vmatmul.mubr.bf16.gmra.mxu0 %v386
    %v429 = vpop.f32.mrf.mxu0
    %v430 = vadd.f32 %v371, %v429
    %v431 = vpop.f32.mrf.mxu0
    %v432 = vpop.f32.mrf.mxu0
    %v433 = vadd.f32 %v374, %v432
    %v434 = vpop.f32.mrf.mxu0
    %435 = vmatprep.mubr.bf16.mxu0 0
    %436 = vmatmul.mubr.bf16.gmra.mxu0 %v389
    %v437 = vpop.f32.mrf.mxu0
    %v438 = vadd.f32 %v379, %v437
    %v439 = vpop.f32.mrf.mxu0
    %v440 = vpop.f32.mrf.mxu0
    %v441 = vpop.f32.mrf.mxu0
    %442 = vdwg.mxu0
    %v443 = vld [vmem:[%s9] sm:$0x1]
    %v445 = vlaneseq
    %v446 = vshrl.u32 %v445, 7
    %v447 = vsub.s32 0, %v446
    %v448 = vrot.slane %v443, %v447
    %v450 = vadd.f32 %v430, %v448
    %v451 = vadd.f32 %v433, %v448
    %v452 = vadd.f32 %v438, %v448
    %v453 = vmul.f32 %v450, 0.2
    %v454 = vmul.f32 %v451, 0.2
    %v455 = vmul.f32 %v452, 0.2
    %v456 = vld [vmem:[%s7] sm:$0xf]
    %v457 = vld [vmem:[%s7 + $0x4] sm:$0xf]
    %v458 = vld [vmem:[%s7 + $0x8] sm:$0xf]
    %v459 = vld [vmem:[%s7 + $0xc] sm:$0xf]
    %v460 = vpack.c.bf16 %v454, %v453
    %v461 = vpack.c.bf16 %v455, %v455
    %v462 = vld [vmem:[%s8] sm:$0x1]
    %v464 = vlaneseq
    %v465 = vshrl.u32 %v464, 7
    %v466 = vsub.s32 0, %v465
    %v467 = vrot.slane %v462, %v466
    %v473 = vunpack.c.l.b16 %v456
    %v474 = vunpack.c.l.b16 %v457
    %v475 = vunpack.c.l.b16 %v458
    %v476 = vunpack.c.l.b16 %v459
    %v477 = vpack.c.b16 %v474, %v473
    %v478 = vpack.c.b16 %v476, %v475
    %vm481 = vcmask 261120
    %v483 = vsel %vm481, %v460, 0
    %v486 = vsel %vm481, %v461, 0
    %488 = vmatprep.subr.bf16.mxu0 0
    %489 = vmatpush1.bf16.msra.mxu0 0
    %490 = vmatprep.subr.bf16.mxu0 0
    %491 = vmatpush1.bf16.msra.mxu0 0
    %492 = vmatprep.subr.bf16.mxu0 0
    %493 = vmatpush1.bf16.msra.mxu0 0
    %494 = vmatprep.subr.bf16.mxu0 0
    %495 = vmatpush1.bf16.msra.mxu0 0
    %496 = vmatprep.subr.bf16.mxu0 0
    %497 = vmatpush1.bf16.msra.mxu0 0
    %498 = vmatprep.subr.bf16.mxu0 0
    %499 = vmatpush1.bf16.msra.mxu0 0
    %500 = vmatprep.subr.bf16.mxu0 0
    %501 = vmatpush1.bf16.msra.mxu0 %v478
    %502 = vmatprep.subr.bf16.mxu0 0
    %503 = vmatpush1.bf16.msra.mxu0 %v477
    %504 = vmatprep.subr.bf16.mxu0 0
    %505 = vmatpush2.bf16.msra.mxu0 0
    %506 = vmatprep.subr.bf16.mxu0 0
    %507 = vmatpush2.bf16.msra.mxu0 0
    %508 = vmatprep.subr.bf16.mxu0 0
    %509 = vmatpush2.bf16.msra.mxu0 0
    %510 = vmatprep.subr.bf16.mxu0 0
    %511 = vmatpush2.bf16.msra.mxu0 0
    %512 = vmatprep.subr.bf16.mxu0 0
    %513 = vmatpush2.bf16.msra.mxu0 0
    %514 = vmatprep.subr.bf16.mxu0 0
    %515 = vmatpush2.bf16.msra.mxu0 0
    %516 = vmatprep.subr.bf16.mxu0 0
    %517 = vmatpush2.bf16.msra.mxu0 0
    %518 = vmatprep.subr.bf16.mxu0 0
    %519 = vmatpush2.bf16.msra.mxu0 0
    %520 = vmatprep.mubr.bf16.mxu0 0
    %521 = vmatmul.mubr.bf16.gmra.mxu0 %v483
    %v522 = vpop.f32.mrf.mxu0
    %v523 = vadd.f32 %v467, %v522
    %v524 = vpop.f32.mrf.mxu0
    %v525 = vpop.f32.mrf.mxu0
    %v526 = vadd.f32 %v467, %v525
    %v527 = vpop.f32.mrf.mxu0
    %528 = vmatprep.mubr.bf16.mxu0 0
    %529 = vmatmul.mubr.bf16.gmra.mxu0 %v486
    %v530 = vpop.f32.mrf.mxu0
    %v531 = vadd.f32 %v467, %v530
    %v532 = vpop.f32.mrf.mxu0
    %v533 = vpop.f32.mrf.mxu0
    %v534 = vpop.f32.mrf.mxu0
    %535 = vdwg.mxu0
    %v536 = vtanh.pop %v523
    %v537 = vtanh.pop %v526
    %v538 = vtanh.pop %v531
    %v539 = vsel %vm305, 1, 0
    %v540 = vsel %vm306, 1, 0
    %v541 = vcvt.s32.f32 %v539
    %v542 = vcvt.s32.f32 %v540
    %v543 = vpack.c.bf16 %v542, %v541
    %v544 = vpack.c.bf16 %v537, %v536
    %v545 = vpack.c.bf16 %v538, %v538
    %vm546 = vcmask 195584
    %v548 = vsel %vm546, %v543, 0
    %v551 = vsel %vm391, %v545, 0
    %553 = vmatprep.subr.bf16.mxu0 0
    %554 = vmatpush1.bf16.msra.mxu0 0
    %555 = vmatprep.subr.bf16.mxu0 0
    %556 = vmatpush1.bf16.msra.mxu0 0
    %557 = vmatprep.subr.bf16.mxu0 0
    %558 = vmatpush1.bf16.msra.mxu0 0
    %559 = vmatprep.subr.bf16.mxu0 0
    %560 = vmatpush1.bf16.msra.mxu0 0
    %561 = vmatprep.subr.bf16.mxu0 0
    %562 = vmatpush1.bf16.msra.mxu0 0
    %563 = vmatprep.subr.bf16.mxu0 0
    %564 = vmatpush1.bf16.msra.mxu0 0
    %565 = vmatprep.subr.bf16.mxu0 0
    %566 = vmatpush1.bf16.msra.mxu0 %v551
    %567 = vmatprep.subr.bf16.mxu0 0
    %568 = vmatpush1.bf16.msra.mxu0 %v544
    %569 = vmatprep.subr.bf16.mxu0 0
    %570 = vmatpush2.bf16.msra.mxu0 0
    %571 = vmatprep.subr.bf16.mxu0 0
    %572 = vmatpush2.bf16.msra.mxu0 0
    %573 = vmatprep.subr.bf16.mxu0 0
    %574 = vmatpush2.bf16.msra.mxu0 0
    %575 = vmatprep.subr.bf16.mxu0 0
    %576 = vmatpush2.bf16.msra.mxu0 0
    %577 = vmatprep.subr.bf16.mxu0 0
    %578 = vmatpush2.bf16.msra.mxu0 0
    %579 = vmatprep.subr.bf16.mxu0 0
    %580 = vmatpush2.bf16.msra.mxu0 0
    %581 = vmatprep.subr.bf16.mxu0 0
    %582 = vmatpush2.bf16.msra.mxu0 0
    %583 = vmatprep.subr.bf16.mxu0 0
    %584 = vmatpush2.bf16.msra.mxu0 0
    %585 = vmatprep.mubr.bf16.mxu0 0
    %586 = vmatmul.mubr.bf16.gmra.mxu0 %v548
    %v587 = vpop.f32.mrf.mxu0
    %v588 = vadd.f32 0.0, %v587
    %v589 = vpop.f32.mrf.mxu0
    %v590 = vpop.f32.mrf.mxu0
    %v591 = vadd.f32 0.0, %v590
    %v592 = vpop.f32.mrf.mxu0
    %593 = vdwg.mxu0
    %v594 = vld [vmem:[%s20] sm:$0xff]
    %v595 = vld [vmem:[%s20 + $0x8] sm:$0xff]
    %597 = vset.pattern.permute.xlu0 0
    %598 = vperm.xlu0 %597, %v594
    %v599 = vpop.permute.xlu0 %598
    %602 = vset.pattern.permute.xlu0 0
    %603 = vperm.xlu0 %602, %v595
    %v604 = vpop.permute.xlu0 %603
    %v606 = vmul.f32 %v588, %v599
    %v607 = vmul.f32 %v591, %v604
    %v608 = vsel %vm285, 1, 0
    %v609 = vsel %vm286, 1, 0
    %v610 = vcvt.s32.f32 %v608
    %v611 = vcvt.s32.f32 %v609
    %v612 = vpack.c.bf16 %v611, %v610
    %v614 = vsel %vm384, %v612, 0
    %616 = vmatprep.subr.bf16.mxu0 0
    %617 = vmatpush1.bf16.msra.mxu0 0
    %618 = vmatprep.subr.bf16.mxu0 0
    %619 = vmatpush1.bf16.msra.mxu0 0
    %620 = vmatprep.subr.bf16.mxu0 0
    %621 = vmatpush1.bf16.msra.mxu0 0
    %622 = vmatprep.subr.bf16.mxu0 0
    %623 = vmatpush1.bf16.msra.mxu0 0
    %624 = vmatprep.subr.bf16.mxu0 0
    %625 = vmatpush1.bf16.msra.mxu0 0
    %626 = vmatprep.subr.bf16.mxu0 0
    %627 = vmatpush1.bf16.msra.mxu0 0
    %628 = vmatprep.subr.bf16.mxu0 0
    %629 = vmatpush1.bf16.msra.mxu0 0
    %630 = vmatprep.subr.bf16.mxu0 0
    %631 = vmatpush1.bf16.msra.mxu0 %v393
    %632 = vmatprep.subr.bf16.mxu0 0
    %633 = vmatpush2.bf16.msra.mxu0 0
    %634 = vmatprep.subr.bf16.mxu0 0
    %635 = vmatpush2.bf16.msra.mxu0 0
    %636 = vmatprep.subr.bf16.mxu0 0
    %637 = vmatpush2.bf16.msra.mxu0 0
    %638 = vmatprep.subr.bf16.mxu0 0
    %639 = vmatpush2.bf16.msra.mxu0 0
    %640 = vmatprep.subr.bf16.mxu0 0
    %641 = vmatpush2.bf16.msra.mxu0 0
    %642 = vmatprep.subr.bf16.mxu0 0
    %643 = vmatpush2.bf16.msra.mxu0 0
    %644 = vmatprep.subr.bf16.mxu0 0
    %645 = vmatpush2.bf16.msra.mxu0 0
    %646 = vmatprep.subr.bf16.mxu0 0
    %647 = vmatpush2.bf16.msra.mxu0 0
    %648 = vmatprep.mubr.bf16.mxu0 0
    %649 = vmatmul.mubr.bf16.gmra.mxu0 %v614
    %v650 = vpop.f32.mrf.mxu0
    %v651 = vadd.f32 0.0, %v650
    %v652 = vpop.f32.mrf.mxu0
    %v653 = vpop.f32.mrf.mxu0
    %v654 = vadd.f32 0.0, %v653
    %v655 = vpop.f32.mrf.mxu0
    %656 = vdwg.mxu0
    %v657 = vsel %vm295, 1, 0
    %v658 = vsel %vm296, 1, 0
    %v659 = vcvt.s32.f32 %v657
    %v660 = vcvt.s32.f32 %v658
    %v661 = vpack.c.bf16 %v660, %v659
    %v663 = vsel %vm384, %v661, 0
    %665 = vmatprep.subr.bf16.mxu0 0
    %666 = vmatpush1.bf16.msra.mxu0 0
    %667 = vmatprep.subr.bf16.mxu0 0
    %668 = vmatpush1.bf16.msra.mxu0 0
    %669 = vmatprep.subr.bf16.mxu0 0
    %670 = vmatpush1.bf16.msra.mxu0 0
    %671 = vmatprep.subr.bf16.mxu0 0
    %672 = vmatpush1.bf16.msra.mxu0 0
    %673 = vmatprep.subr.bf16.mxu0 0
    %674 = vmatpush1.bf16.msra.mxu0 0
    %675 = vmatprep.subr.bf16.mxu0 0
    %676 = vmatpush1.bf16.msra.mxu0 0
    %677 = vmatprep.subr.bf16.mxu0 0
    %678 = vmatpush1.bf16.msra.mxu0 0
    %679 = vmatprep.subr.bf16.mxu0 0
    %680 = vmatpush1.bf16.msra.mxu0 %v393
    %681 = vmatprep.subr.bf16.mxu0 0
    %682 = vmatpush2.bf16.msra.mxu0 0
    %683 = vmatprep.subr.bf16.mxu0 0
    %684 = vmatpush2.bf16.msra.mxu0 0
    %685 = vmatprep.subr.bf16.mxu0 0
    %686 = vmatpush2.bf16.msra.mxu0 0
    %687 = vmatprep.subr.bf16.mxu0 0
    %688 = vmatpush2.bf16.msra.mxu0 0
    %689 = vmatprep.subr.bf16.mxu0 0
    %690 = vmatpush2.bf16.msra.mxu0 0
    %691 = vmatprep.subr.bf16.mxu0 0
    %692 = vmatpush2.bf16.msra.mxu0 0
    %693 = vmatprep.subr.bf16.mxu0 0
    %694 = vmatpush2.bf16.msra.mxu0 0
    %695 = vmatprep.subr.bf16.mxu0 0
    %696 = vmatpush2.bf16.msra.mxu0 0
    %697 = vmatprep.mubr.bf16.mxu0 0
    %698 = vmatmul.mubr.bf16.gmra.mxu0 %v663
    %v699 = vpop.f32.mrf.mxu0
    %v700 = vadd.f32 0.0, %v699
    %v701 = vpop.f32.mrf.mxu0
    %v702 = vpop.f32.mrf.mxu0
    %v703 = vadd.f32 0.0, %v702
    %v704 = vpop.f32.mrf.mxu0
    %705 = vdwg.mxu0
    %s706 = sld [smem:[#allocation2]]
    %v707 = vstv %s706
    %s708 = sld [smem:[#allocation2 + $0x1]]
    %v709 = vmul.f32 %v651, %v700
    %v710 = vmul.f32 %v654, %v703
    %v711 = vsel %vm481, %v709, 0.0
    %712 = vadd.xlane.f32.xlu0 %v711
    %v713 = vpop.xlane.xlu0 %712
    %v714 = vsel %vm481, %v710, 0.0
    %715 = vadd.xlane.f32.xlu0 %v714
    %v716 = vpop.xlane.xlu0 %715
    %v717 = vld [vmem:[%s10] sm:$0x1]
    %v719 = vlaneseq
    %v720 = vshrl.u32 %v719, 7
    %v721 = vsub.s32 0, %v720
    %v722 = vrot.slane %v717, %v721
    %v724 = vmul.f32 %v722, %v606
    %v725 = vmul.f32 %v722, %v607
    %v726 = vsel %vm481, %v724, 0.0
    %727 = vadd.xlane.f32.xlu0 %v726
    %v728 = vpop.xlane.xlu0 %727
    %v729 = vsel %vm481, %v725, 0.0
    %730 = vadd.xlane.f32.xlu0 %v729
    %v731 = vpop.xlane.xlu0 %730
    %v732 = vld [vmem:[%s21] sm:$0xff]
    %v733 = vld [vmem:[%s21 + $0x8] sm:$0xff]
    %v734 = vmul.f32 %v707, %v713
    %v735 = vmul.f32 %v707, %v716
    %v736 = vsub.f32 1.0, %v707
    %v737 = vmul.f32 %v736, %v728
    %v738 = vmul.f32 %v736, %v731
    %v739 = vadd.f32 %v734, %v737
    %v740 = vadd.f32 %v735, %v738
    %v741 = vmul.f32 %v732, %v739
    %v742 = vmul.f32 %v733, %v740
    %v743 = vtanh.pop %v741
    %v744 = vtanh.pop %v742
    %v745 = vstv %s708
    %v746 = vmul.f32 %v745, %v743
    %v747 = vmul.f32 %v745, %v744
    %vm748 = vcmask 7168
    %v749 = vsel %vm748, %v746, -inf
    %v750 = vsel %vm748, %v747, -inf
    %v751 = vmax.f32 %v749, %v750
    %752 = vmax.xlane.f32.xlu0 %v751
    %v753 = vpop.xlane.xlu0 %752
    %v754 = vrot.slane %v753, 4
    %v755 = vmax.f32 %v753, %v754
    %v756 = vrot.slane %v755, 2
    %v757 = vmax.f32 %v755, %v756
    %v758 = vrot.slane %v757, 1
    %v759 = vmax.f32 %v757, %v758
    %s760 = vtos %v759
    %v761 = vstv %s760
    %v762 = vsub.f32 %v746, %v761
    %v763 = vsub.f32 %v747, %v761
    %v764 = vmul.f32 %v762, 1.442695
    %v765 = vpow.pop %v764
    %v766 = vmul.f32 %v763, 1.442695
    %v767 = vpow.pop %v766
    %769 = vset.pattern.permute.xlu0 0
    %770 = vperm.xlu0 %769, %v765
    %v771 = vpop.permute.xlu0 %770
    %774 = vset.pattern.permute.xlu0 0
    %775 = vperm.xlu0 %774, %v767
    %v776 = vpop.permute.xlu0 %775
    %v778 = vmul.f32 %v771, %v651
    %v779 = vmul.f32 %v776, %v654
    %v780 = vmul.f32 %v771, %v606
    %v781 = vmul.f32 %v776, %v607
    %v782 = vld [vmem:[%s22] sm:$0xff]
    %v783 = vld [vmem:[%s22 + $0x8] sm:$0xff]
    %v784 = vmul.f32 %v782, %v746
    %v785 = vmul.f32 %v783, %v747
    %v786 = vld [vmem:[%s23] sm:$0xff]
    %v787 = vld [vmem:[%s23 + $0x8] sm:$0xff]
    %v788 = vmul.f32 %v786, %v746
    %v789 = vmul.f32 %v787, %v747
    %792 = vrot.lane.b32.xlu0 %v780, 32
    %v793 = vpop.permute.xlu0 %792
    %794 = vrot.lane.b32.xlu0 %v781, 32
    %v795 = vpop.permute.xlu0 %794
    %798 = vrot.lane.b32.xlu0 %v765, 64
    %v799 = vpop.permute.xlu0 %798
    %800 = vrot.lane.b32.xlu0 %v767, 64
    %v801 = vpop.permute.xlu0 %800
    %806 = vrot.lane.b32.xlu0 %v784, 65
    %v807 = vpop.permute.xlu0 %806
    %808 = vrot.lane.b32.xlu0 %v785, 65
    %v809 = vpop.permute.xlu0 %808
    %814 = vrot.lane.b32.xlu0 %v788, 66
    %v815 = vpop.permute.xlu0 %814
    %816 = vrot.lane.b32.xlu0 %v789, 66
    %v817 = vpop.permute.xlu0 %816
    %v820 = vsel %vm481, %v778, %v793
    %v821 = vsel %vm481, %v779, %v795
    %vm822 = vcmask 523264
    %v823 = vsel %vm822, %v820, %v799
    %v824 = vsel %vm822, %v821, %v801
    %vm825 = vcmask 531456
    %v826 = vsel %vm825, %v823, %v807
    %v827 = vsel %vm825, %v824, %v809
    %vm828 = vcmask 539648
    %v829 = vsel %vm828, %v826, %v815
    %v830 = vsel %vm828, %v827, %v817
    %vm831 = vcmask 547840
    %v832 = vsel %vm831, %v829, 0.0
    %v833 = vsel %vm831, %v830, 0.0
    %v834 = vsel %vm312, 1, 0
    %v835 = vcvt.s32.f32 %v834
    %v836 = vpack.c.bf16 %v835, %v835
    %v837 = vpack.c.bf16 %v833, %v832
    %v839 = vsel %vm108, %v836, 0
    %841 = vmatprep.subr.bf16.mxu0 0
    %842 = vmatpush1.bf16.msra.mxu0 0
    %843 = vmatprep.subr.bf16.mxu0 0
    %844 = vmatpush1.bf16.msra.mxu0 0
    %845 = vmatprep.subr.bf16.mxu0 0
    %846 = vmatpush1.bf16.msra.mxu0 0
    %847 = vmatprep.subr.bf16.mxu0 0
    %848 = vmatpush1.bf16.msra.mxu0 0
    %849 = vmatprep.subr.bf16.mxu0 0
    %850 = vmatpush1.bf16.msra.mxu0 0
    %851 = vmatprep.subr.bf16.mxu0 0
    %852 = vmatpush1.bf16.msra.mxu0 0
    %853 = vmatprep.subr.bf16.mxu0 0
    %854 = vmatpush1.bf16.msra.mxu0 0
    %855 = vmatprep.subr.bf16.mxu0 0
    %856 = vmatpush1.bf16.msra.mxu0 %v837
    %857 = vmatprep.subr.bf16.mxu0 0
    %858 = vmatpush2.bf16.msra.mxu0 0
    %859 = vmatprep.subr.bf16.mxu0 0
    %860 = vmatpush2.bf16.msra.mxu0 0
    %861 = vmatprep.subr.bf16.mxu0 0
    %862 = vmatpush2.bf16.msra.mxu0 0
    %863 = vmatprep.subr.bf16.mxu0 0
    %864 = vmatpush2.bf16.msra.mxu0 0
    %865 = vmatprep.subr.bf16.mxu0 0
    %866 = vmatpush2.bf16.msra.mxu0 0
    %867 = vmatprep.subr.bf16.mxu0 0
    %868 = vmatpush2.bf16.msra.mxu0 0
    %869 = vmatprep.subr.bf16.mxu0 0
    %870 = vmatpush2.bf16.msra.mxu0 0
    %871 = vmatprep.subr.bf16.mxu0 0
    %872 = vmatpush2.bf16.msra.mxu0 0
    %873 = vmatprep.mubr.bf16.mxu0 0
    %874 = vmatmul.mubr.bf16.gmra.mxu0 %v839
    %v875 = vpop.f32.mrf.mxu0
    %v876 = vadd.f32 0.0, %v875
    %v877 = vpop.f32.mrf.mxu0
    %v878 = vpop.f32.mrf.mxu0
    %v879 = vpop.f32.mrf.mxu0
    %880 = vdwg.mxu0
    %vm881 = vcmp.gt.f32.partialorder %v876, 0.0
    %v882 = vsel %vm881, %v876, 1.0
    %v883 = vld [vmem:[%s11] sm:$0xf]
    %v884 = vld [vmem:[%s11 + $0x4] sm:$0xf]
    %v885 = vld [vmem:[%s11 + $0x8] sm:$0xf]
    %v886 = vld [vmem:[%s11 + $0xc] sm:$0xf]
    %v887 = vld [vmem:[%s11 + $0x10] sm:$0xf]
    %v888 = vld [vmem:[%s11 + $0x14] sm:$0xf]
    %v889 = vld [vmem:[%s11 + $0x18] sm:$0xf]
    %v890 = vld [vmem:[%s11 + $0x1c] sm:$0xf]
    %v891 = vpack.c.bf16 %v876, %v876
    %v900 = vunpack.c.l.b16 %v883
    %v901 = vunpack.c.l.b16 %v884
    %v902 = vunpack.c.l.b16 %v885
    %v903 = vunpack.c.l.b16 %v886
    %v904 = vunpack.c.l.b16 %v887
    %v905 = vunpack.c.l.b16 %v888
    %v906 = vunpack.c.l.b16 %v889
    %v907 = vunpack.c.l.b16 %v890
    %v908 = vpack.c.b16 %v901, %v900
    %v909 = vpack.c.b16 %v903, %v902
    %v910 = vpack.c.b16 %v905, %v904
    %v911 = vpack.c.b16 %v907, %v906
    %v917 = vsel %vm822, %v891, 0
    %919 = vmatprep.subr.bf16.mxu0 0
    %920 = vmatpush1.bf16.msra.mxu0 0
    %921 = vmatprep.subr.bf16.mxu0 0
    %922 = vmatpush1.bf16.msra.mxu0 0
    %923 = vmatprep.subr.bf16.mxu0 0
    %924 = vmatpush1.bf16.msra.mxu0 0
    %925 = vmatprep.subr.bf16.mxu0 0
    %926 = vmatpush1.bf16.msra.mxu0 0
    %927 = vmatprep.subr.bf16.mxu0 0
    %928 = vmatpush1.bf16.msra.mxu0 %v911
    %929 = vmatprep.subr.bf16.mxu0 0
    %930 = vmatpush1.bf16.msra.mxu0 %v910
    %931 = vmatprep.subr.bf16.mxu0 0
    %932 = vmatpush1.bf16.msra.mxu0 %v909
    %933 = vmatprep.subr.bf16.mxu0 0
    %934 = vmatpush1.bf16.msra.mxu0 %v908
    %935 = vmatprep.subr.bf16.mxu0 0
    %936 = vmatpush2.bf16.msra.mxu0 0
    %937 = vmatprep.subr.bf16.mxu0 0
    %938 = vmatpush2.bf16.msra.mxu0 0
    %939 = vmatprep.subr.bf16.mxu0 0
    %940 = vmatpush2.bf16.msra.mxu0 0
    %941 = vmatprep.subr.bf16.mxu0 0
    %942 = vmatpush2.bf16.msra.mxu0 0
    %943 = vmatprep.subr.bf16.mxu0 0
    %944 = vmatpush2.bf16.msra.mxu0 0
    %945 = vmatprep.subr.bf16.mxu0 0
    %946 = vmatpush2.bf16.msra.mxu0 0
    %947 = vmatprep.subr.bf16.mxu0 0
    %948 = vmatpush2.bf16.msra.mxu0 0
    %949 = vmatprep.subr.bf16.mxu0 0
    %950 = vmatpush2.bf16.msra.mxu0 0
    %951 = vmatprep.mubr.bf16.mxu0 0
    %952 = vmatmul.mubr.bf16.gmra.mxu0 %v917
    %v953 = vpop.f32.mrf.mxu0
    %v954 = vadd.f32 0.0, %v953
    %v955 = vpop.f32.mrf.mxu0
    %v956 = vpop.f32.mrf.mxu0
    %v957 = vpop.f32.mrf.mxu0
    %958 = vdwg.mxu0
    %960 = vset.pattern.permute.xlu0 64
    %961 = vperm.xlu0 %960, %v882
    %v962 = vpop.permute.xlu0 %961
    %v964 = vrcp.pop %v962
    %v965 = vmul.f32 %v954, %v964
    %v966 = vld [vmem:[%s12] sm:$0x1]
    %v968 = vlaneseq
    %v969 = vshrl.u32 %v968, 7
    %v970 = vsub.s32 0, %v969
    %v971 = vrot.slane %v966, %v970
    %v973 = vadd.f32 %v965, %v971
    %v974 = vadd.f32 %v973, %v147
    %v975 = vmax.f32 %v974, 0.0
    %977 = vrot.lane.b32.xlu0 %v876, 95
    %v978 = vpop.permute.xlu0 %977
    %v980 = vsel %vm481, %v975, %v978
    %vm981 = vcmask 269312
    %v982 = vsel %vm981, %v980, %v978
    %vm983 = vcmask 277504
    %v984 = vsel %vm983, %v982, 0.0
    %985 = vst [vmem:[#allocation5] sm:$0xff] %v984
    // Predicated region
    $region102: #{tpu_custom_call.1} parent=1 // pred_check
      _
    $region103: #{tpu_custom_call.1} parent=1 // pred_check_branch
      %987 = sbr.rel (0) target = $region105
    $region104: #{tpu_custom_call.1} parent=1 // pred_region
      %s989 = ssub.s32 128, 128
      %990 = vsyncadd [#allocation3], %s989
      %s992 = sshll.u32 [#allocation5], 4
      %s993 = int_to_ptr.vmem [resolvable:$true] %s992
      %995 = dma.vmem_to_hbm [thread:$0]  %s993, 128, %s24, [#allocation3]
    $region105: #{tpu_custom_call.1} parent=1 // pred_fallthru
      _
    // Predicated region
    $region106: #{tpu_custom_call.1} parent=1 // pred_check
      _
    $region107: #{tpu_custom_call.1} parent=1 // pred_check_branch
      %997 = sbr.rel (0) target = $region109
    $region108: #{tpu_custom_call.1} parent=1 // pred_region
      %998 = dma.done [#allocation3], 128
    $region109: #{tpu_custom_call.1} parent=1 // pred_fallthru
      _
    %999 = vsyncpa [#allocation3], 1
    %1000 = vsyncpa [#allocation4], 1

</llo_original>
